<compile_context>
chip_gen: v7x
topology: tpu7x:2x2x1
jax: 0.10.0
libtpu: 0.0.40
codegen_flags: <defaults>
</compile_context>

<pallas_src>
import jax
import jax.numpy as jnp
from jax.experimental import pallas as pl
from jax.experimental.pallas import tpu as pltpu


def _cdiv(a: int, b: int) -> int:
    return -(-a // b)


def _round_up(a: int, b: int) -> int:
    return _cdiv(a, b) * b


def _hsigmoid_kernel(x_ref, o_ref):
    x = x_ref[...]
    # Weak-typed Python constants keep the input dtype (no bf16 -> f32 promo).
    # True division by 6 (not * (1/6)) for exact parity with torch relu6(x+3)/6.
    o_ref[...] = (jnp.clip(x + 3.0, 0.0, 6.0) / 6.0).astype(o_ref.dtype)


# Tunables.
_TINY_BYPASS_BYTES = 256 * 1024      # below this, plain jnp fuses better than a launch
_MIN_BLOCK_BYTES = 512 * 1024        # >=512 KiB blocks already reach ~85% of HBM roofline
_MAX_BLOCK_BYTES = 4 * 1024 * 1024   # 2 arrays x 2 buffers x 4 MiB = 16 MiB VMEM footprint
_VMEM_LIMIT_BYTES = 32 * 1024 * 1024  # explicit; within physical VMEM on v5e/v6e/v7x
_TARGET_STEPS = 8                    # ~4 pipelined steps per TensorCore on v7x


def hsigmoid(x: jax.Array, *, force_pallas: bool = False) -> jax.Array:
    """Elementwise hard-sigmoid, matching torch F.relu6(x + 3) / 6."""
    orig_shape = x.shape
    dtype = x.dtype
    total = x.size
    if total == 0:
        return x

    itemsize = jnp.dtype(dtype).itemsize

    # Tiny inputs: pallas_call launch + reshape plumbing is pure overhead and
    # blocks XLA from fusing this elementwise op into producers/consumers.
    if total * itemsize < _TINY_BYPASS_BYTES and not force_pallas:
        return jnp.clip(x + 3.0, 0.0, 6.0) / 6.0

    # Sub-32-bit dtypes pack along sublanes: (8,128) f32, (16,128) bf16, (32,128) int8.
    row_align = 8 * max(1, 4 // itemsize)

    # Lane-dense slab with NO host-side padding whenever possible.
    pad_to = total
    if total % 1024 == 0 and total // 1024 >= row_align:
        lanes = 1024
    elif total % 128 == 0:
        lanes = 128
    else:
        lanes = 128
        pad_to = _round_up(total, 128)   # rare fallback: minimal (<128 elem) pad

    flat = x.reshape(-1)
    if pad_to != total:
        flat = jnp.pad(flat, (0, pad_to - total))
    rows = pad_to // lanes
    x2d = flat.reshape(rows, lanes)

    # Row-tile selection: ~_TARGET_STEPS grid steps so double-buffering overlaps
    # in/out DMA with compute; floor for per-step overhead, cap for VMEM.
    row_bytes = lanes * itemsize
    min_rows = _round_up(max(1, _cdiv(_MIN_BLOCK_BYTES, row_bytes)), row_align)
    max_rows = max(row_align, (_MAX_BLOCK_BYTES // row_bytes) // row_align * row_align)

    tile_rows = _round_up(_cdiv(rows, _TARGET_STEPS), row_align)
    tile_rows = max(min_rows, min(tile_rows, max_rows))
    if tile_rows >= rows:
        # Single block covering the whole slab (full-extent rows is always a
        # legal block shape, even when rows is not a multiple of the sublane tile).
        tile_rows = rows
    else:
        # v7x megacore: prefer an even step count so both TensorCores get the
        # same number of blocks.
        num_steps = _cdiv(rows, tile_rows)
        if num_steps % 2 == 1:
            alt = _round_up(_cdiv(rows, num_steps + 1), row_align)
            if row_align <= alt < rows and _cdiv(rows, alt) % 2 == 0:
                tile_rows = alt

    grid = (_cdiv(rows, tile_rows),)   # final block may be ragged; writes OOB are dropped

    out2d = pl.pallas_call(
        _hsigmoid_kernel,
        out_shape=jax.ShapeDtypeStruct((rows, lanes), dtype),
        grid=grid,
        in_specs=[pl.BlockSpec((tile_rows, lanes), lambda i: (i, 0))],
        out_specs=pl.BlockSpec((tile_rows, lanes), lambda i: (i, 0)),
        compiler_params=pltpu.CompilerParams(
            dimension_semantics=("parallel",),
            vmem_limit_bytes=_VMEM_LIMIT_BYTES,
        ),
        cost_estimate=pl.CostEstimate(
            flops=3 * total,
            transcendentals=0,
            bytes_accessed=2 * total * itemsize,
        ),
    )(x2d)

    out_flat = out2d.reshape(-1)
    if pad_to != total:
        out_flat = out_flat[:total]
    return out_flat.reshape(orig_shape)


if __name__ == "__main__":
    def ref(v):
        return jnp.clip(v + 3.0, 0.0, 6.0) / 6.0

    # 1) Spec shape from the module (NCHW: batch=2, channels=4, 16x16 spatial).
    #    Tiny, so force the Pallas path to actually exercise the kernel.
    x = jax.random.normal(jax.random.PRNGKey(0), (2, 4, 16, 16), dtype=jnp.float32) * 4.0
    y = hsigmoid(x, force_pallas=True)
    jax.block_until_ready(y)
    assert y.shape == x.shape and y.dtype == x.dtype
    assert jnp.allclose(y, ref(x), atol=1e-6, rtol=1e-6)

    # 2) 1024-divisible f32 input -> lanes=1024, multi-step pipelined grid, zero padding.
    x2 = jax.random.normal(jax.random.PRNGKey(1), (8, 32, 64, 64), dtype=jnp.float32) * 4.0
    y2 = hsigmoid(x2)
    jax.block_until_ready(y2)
    assert jnp.allclose(y2, ref(x2), atol=1e-6, rtol=1e-6)

    # 3) Non-128-divisible shape -> minimal-pad fallback path.
    x3 = jax.random.normal(jax.random.PRNGKey(2), (3, 5, 7, 11), dtype=jnp.float32) * 4.0
    y3 = hsigmoid(x3, force_pallas=True)
    jax.block_until_ready(y3)
    assert jnp.allclose(y3, ref(x3), atol=1e-6, rtol=1e-6)

    # 4) bf16 input -> dtype-aware (16-row) sublane alignment path.
    x4 = (jax.random.normal(jax.random.PRNGKey(3), (4, 8, 32, 32), dtype=jnp.float32) * 4.0
          ).astype(jnp.bfloat16)
    y4 = hsigmoid(x4, force_pallas=True)
    jax.block_until_ready(y4)
    assert y4.dtype == jnp.bfloat16
    assert jnp.allclose(y4.astype(jnp.float32), ref(x4).astype(jnp.float32),
                        atol=2e-2, rtol=2e-2)

    print("KERNEL_OK")
</pallas_src>

<mosaic_0001>
module attributes {stable_mosaic.version = 11 : i64} {
  func.func @_hsigmoid_kernel(%arg0: i32, %arg1: memref<16x128xf32, #tpu.memory_space<vmem>>, %arg2: memref<16x128xf32, #tpu.memory_space<vmem>>) attributes {dimension_semantics = [#tpu.dimension_semantics<parallel>], iteration_bounds = array<i64: 1>, scalar_prefetch = 0 : i64, scratch_operands = 0 : i64, tpu.core_type = #tpu.core_type<tc>, window_params = [{transform_indices = @transform_0, window_bounds = array<i64: 16, 128>}, {transform_indices = @transform_1, window_bounds = array<i64: 16, 128>}]} {
    %c0 = arith.constant 0 : index
    %c0_0 = arith.constant 0 : index
    %0 = vector.load %arg1[%c0, %c0_0] : memref<16x128xf32, #tpu.memory_space<vmem>>, vector<16x128xf32>
    %cst = arith.constant 3.000000e+00 : f32
    %1 = vector.broadcast %cst : f32 to vector<16x128xf32>
    %2 = arith.addf %0, %1 : vector<16x128xf32>
    %cst_1 = arith.constant 0.000000e+00 : f32
    %cst_2 = arith.constant 6.000000e+00 : f32
    %3 = vector.broadcast %cst_1 : f32 to vector<16x128xf32>
    %4 = arith.maximumf %3, %2 : vector<16x128xf32>
    %5 = vector.broadcast %cst_2 : f32 to vector<16x128xf32>
    %6 = arith.minimumf %5, %4 : vector<16x128xf32>
    %cst_3 = arith.constant 6.000000e+00 : f32
    %7 = vector.broadcast %cst_3 : f32 to vector<16x128xf32>
    %8 = arith.divf %6, %7 : vector<16x128xf32>
    %c0_4 = arith.constant 0 : index
    %c0_5 = arith.constant 0 : index
    %9 = vector.load %arg2[%c0_4, %c0_5] : memref<16x128xf32, #tpu.memory_space<vmem>>, vector<16x128xf32>
    tpu.vector_store %arg2[%c0_4, %c0_5], %8 {strides = array<i32>} : memref<16x128xf32, #tpu.memory_space<vmem>>, vector<16x128xf32>,
    return
  }
  func.func @transform_0(%arg0: i32) -> (i32, i32) {
    %c0_i32 = arith.constant 0 : i32
    %c0_i32_0 = arith.constant 0 : i32
    return %arg0, %c0_i32 : i32, i32
  }
  func.func @transform_1(%arg0: i32) -> (i32, i32) {
    %c0_i32 = arith.constant 0 : i32
    %c0_i32_0 = arith.constant 0 : i32
    return %arg0, %c0_i32 : i32, i32
  }
}

</mosaic_0001>

<llo_original>
// kernel: tpu_custom_call.1
$region0: #{tpu_custom_call.1}
  #allocation0 [shape = 'u32[]', space=smem, size = 0x4, offset = 0x4, fixed_abs, tag = 'smem constant byte address 0x4 - core index']
  #allocation1 [shape = 'u32[144,128]{1,0:T(1,128)}', space=vmem, size = 0x12000, scoped, tag = 'internal scratch']
  %s0 = inlined_call_operand.hbm [shape: f32[16,128], index: 0, kind: input, shape index: {}]
  %s1 = inlined_call_operand.hbm [shape: f32[16,128], index: 1, kind: output, shape index: {}]
  %s2 = sld [smem:[#allocation0]]
  $region18: #{tpu_custom_call.1} parent=0
    _
  %s4 = ssub.s32 1, %s2
  %s5 = scalar_select 0, %s4, %s2
  $region1: #{tpu_custom_call.1} parent=0
    #allocation2 [shape = 'u8[8192]{0}', space=vmem, size = 0x2000, scoped, tag = 'input window, operand 0, single buffered']
    #allocation3 [shape = 's32[1]{0}', space=sflag, size = 0x4, scoped, tag = 'scoped memory for tpu_custom_call.1']
    #allocation4 [shape = 's32[1]{0}', space=sflag, size = 0x4, scoped, tag = 'scoped memory for tpu_custom_call.1']
    #allocation5 [shape = 'u8[8192]{0}', space=vmem, size = 0x2000, scoped, tag = 'output window, operand 0, single buffered']
    %6 = vsyncpa [#allocation3], 0
    %7 = vsyncpa [#allocation4], 0
    // Predicated region
    $region2: #{tpu_custom_call.1} parent=1 // pred_check
      _
    $region3: #{tpu_custom_call.1} parent=1 // pred_check_branch
      %9 = sbr.rel (0) target = $region5
    $region4: #{tpu_custom_call.1} parent=1 // pred_region
      %s11 = ssub.s32 256, 256
      %12 = vsyncadd [#allocation3], %s11
      %s13 = sshll.u32 [#allocation2], 4
      %s14 = int_to_ptr.vmem [resolvable:$true] %s13
      %19 = dma.hbm_to_vmem [thread:$0]  %s0, 256, %s14, [#allocation3], 128, 128, 8
    $region5: #{tpu_custom_call.1} parent=1 // pred_fallthru
      _
    // Predicated region
    $region6: #{tpu_custom_call.1} parent=1 // pred_check
      _
    $region7: #{tpu_custom_call.1} parent=1 // pred_check_branch
      %21 = sbr.rel (0) target = $region9
    $region8: #{tpu_custom_call.1} parent=1 // pred_region
      %22 = dma.done [#allocation3], 256
    $region9: #{tpu_custom_call.1} parent=1 // pred_fallthru
      _
    %v23 = vld [vmem:[#allocation2] sm:$0xff]
    %v24 = vld [vmem:[#allocation2 + $0x8] sm:$0xff]
    %v25 = vadd.f32 %v23, 3.0
    %v26 = vadd.f32 %v24, 3.0
    %v27 = vmax.f32 %v25, 0.0
    %v28 = vmax.f32 %v26, 0.0
    %v29 = vmin.f32 %v27, 6.0
    %v30 = vmin.f32 %v28, 6.0
    %v31 = vrcp.pop 6.0
    %v32 = vmul.f32 %v29, %v31
    %v33 = vmul.f32 %v30, %v31
    %34 = vst [vmem:[#allocation5] sm:$0xff] %v32
    %35 = vst [vmem:[#allocation5 + $0x8] sm:$0xff] %v33
    // Predicated region
    $region10: #{tpu_custom_call.1} parent=1 // pred_check
      _
    $region11: #{tpu_custom_call.1} parent=1 // pred_check_branch
      %37 = sbr.rel (0) target = $region13
    $region12: #{tpu_custom_call.1} parent=1 // pred_region
      %s39 = ssub.s32 256, 256
      %40 = vsyncadd [#allocation4], %s39
      %s41 = sshll.u32 [#allocation5], 4
      %s42 = int_to_ptr.vmem [resolvable:$true] %s41
      %47 = dma.vmem_to_hbm [thread:$0]  %s42, 256, %s1, [#allocation4], 128, 128, 8
    $region13: #{tpu_custom_call.1} parent=1 // pred_fallthru
      _
    // Predicated region
    $region14: #{tpu_custom_call.1} parent=1 // pred_check
      _
    $region15: #{tpu_custom_call.1} parent=1 // pred_check_branch
      %49 = sbr.rel (0) target = $region17
    $region16: #{tpu_custom_call.1} parent=1 // pred_region
      %50 = dma.done [#allocation4], 256
    $region17: #{tpu_custom_call.1} parent=1 // pred_fallthru
      _
    %51 = vsyncpa [#allocation3], 1
    %52 = vsyncpa [#allocation4], 1

</llo_original>
